<compile_context>
chip_gen: v7x
topology: tpu7x:2x2x1
jax: 0.10.0
libtpu: 0.0.40
codegen_flags: <defaults>
</compile_context>

<pallas_src>
import math

import jax
import jax.numpy as jnp
from jax.experimental import pallas as pl
from jax.experimental.pallas import tpu as pltpu


def _mc_image_kernel(x_ref, weff_ref, bias_ref, o_ref):
    # x_ref    : (C_in, T_hw)   spatial tile of one batch element
    # weff_ref : (C_out, C_in)  modulation-folded 1x1 conv weight for this b
    # bias_ref : (C_out, 1)     output bias
    # o_ref    : (C_out, T_hw)
    out = jnp.dot(weff_ref[...], x_ref[...],
                  preferred_element_type=jnp.float32)          # (C_out, T_hw)
    o_ref[...] = (out + bias_ref[...]).astype(o_ref.dtype)


def _cdiv(a, b):
    return (a + b - 1) // b


def _round_up(a, b):
    return _cdiv(a, b) * b


def _vmem_capacity_bytes(default=64 * 1024 * 1024):
    """Physical VMEM of the current chip; conservative fallback (v7x size)."""
    try:
        info = pltpu.get_tpu_info()
        cap = getattr(info, "vmem_capacity_bytes", None)
        if cap:
            return int(cap)
    except Exception:
        pass
    return default


def _pick_hw_tile(hw, c_in, c_out, itemsize, budget_bytes):
    """Largest multiple-of-128 lane tile whose double-buffered x+out blocks
    fit the pipeline budget.  No divisor requirement: the grid uses cdiv and
    the last partial block is masked by Pallas."""
    if hw <= 128:
        return hw                      # full-extent last dim: legal block
    hw_pad = 128 * _cdiv(hw, 128)
    per_lane = 2 * (_round_up(c_in, 8) + _round_up(c_out, 8)) * itemsize
    t = (budget_bytes // max(per_lane, 1)) // 128 * 128
    return max(128, min(t, hw_pad))


def _vmem_usage_bytes(c_in, c_out, t_hw, itemsize):
    """Conservative estimate of the pipelined block footprint (double
    buffered, sublane/lane padded)."""
    ci8, co8 = _round_up(c_in, 8), _round_up(c_out, 8)
    x_b = 2 * ci8 * t_hw * itemsize
    o_b = 2 * co8 * t_hw * itemsize
    w_b = 2 * co8 * _round_up(c_in, 128) * itemsize
    b_b = 2 * co8 * 128 * 4
    return x_b + o_b + w_b + b_b


def multichannel_image(hidden, style, params):
    """hidden: (B, C_in, H, W) NCHW; style: (B, style_dim)."""
    wconv = params["conv_weight"]        # (C_out, C_in, 1, 1)
    wmod = params["mod_weight"]          # (C_in, style_dim)
    bmod = params["mod_bias"]            # (C_in,)
    bias = params["out_bias"]            # (1, C_out, 1, 1)

    B, C_in, H, W = hidden.shape
    C_out = wconv.shape[0]
    HW = H * W
    scale = 1.0 / math.sqrt(C_in * 1 * 1)          # kernel_size == 1

    # Tiny XLA ops outside the kernel: modulation Linear + fold into weight.
    mod = scale * (style.astype(jnp.float32) @ wmod.T.astype(jnp.float32)
                   + bmod.astype(jnp.float32))               # (B, C_in)
    wconv2d = wconv.reshape(C_out, C_in).astype(jnp.float32)
    w_eff = (wconv2d[None, :, :] * mod[:, None, :]).astype(hidden.dtype)
    bias_col = bias.reshape(C_out, 1).astype(jnp.float32)

    x_flat = hidden.reshape(B, C_in, HW)
    itemsize = jnp.dtype(hidden.dtype).itemsize

    # Generation-aware sizing: budget ~ cap/3 (<= 48 MiB), vmem limit derived
    # from the real block footprint with headroom (safe on v7x's 64 MiB,
    # generous on v5e/v6e's 128 MiB).
    cap = _vmem_capacity_bytes()
    budget = min(cap // 3, 48 * 1024 * 1024)
    t_hw = _pick_hw_tile(HW, C_in, C_out, itemsize, budget)

    # Make sure v7x's two TensorCores both get work when B == 1.
    if B * _cdiv(HW, t_hw) < 2 and HW > 128:
        t_hw = 128 * _cdiv(_cdiv(HW, 2), 128)
    n_hw = _cdiv(HW, t_hw)

    usage = _vmem_usage_bytes(C_in, C_out, t_hw, itemsize)
    vmem_limit = int(min(cap * 0.8, usage + 16 * 1024 * 1024))
    vmem_limit = max(vmem_limit, 16 * 1024 * 1024)

    out_flat = pl.pallas_call(
        _mc_image_kernel,
        out_shape=jax.ShapeDtypeStruct((B, C_out, HW), hidden.dtype),
        grid_spec=pltpu.PrefetchScalarGridSpec(
            num_scalar_prefetch=0,
            grid=(B, n_hw),
            in_specs=[
                pl.BlockSpec((pl.Squeezed(), C_in, t_hw),
                             lambda b, s: (b, 0, s)),                  # x
                pl.BlockSpec((pl.Squeezed(), C_out, C_in),
                             lambda b, s: (b, 0, 0)),                  # w_eff
                pl.BlockSpec((C_out, 1), lambda b, s: (0, 0)),         # bias
            ],
            out_specs=pl.BlockSpec((pl.Squeezed(), C_out, t_hw),
                                   lambda b, s: (b, 0, s)),
        ),
        compiler_params=pltpu.CompilerParams(
            dimension_semantics=("parallel", "parallel"),
            vmem_limit_bytes=vmem_limit),
    )(x_flat, w_eff, bias_col)

    return out_flat.reshape(B, C_out, H, W)


def _reference(hidden, style, params):
    """Pure-JAX reference matching the PyTorch forward exactly."""
    wconv = params["conv_weight"].reshape(params["conv_weight"].shape[0], -1)
    wmod = params["mod_weight"]
    bmod = params["mod_bias"]
    bias = params["out_bias"]
    B, C_in, H, W = hidden.shape
    scale = 1.0 / math.sqrt(C_in)
    mod = scale * (style @ wmod.T + bmod)            # (B, C_in)
    x = mod[:, :, None, None] * hidden               # (B, C_in, H, W)
    out = jnp.einsum("oc,bchw->bohw", wconv, x)      # 1x1 conv, pad 0
    return out + bias


if __name__ == "__main__":
    B, C_in, C_out, style_dim, H, W = 2, 4, 8, 32, 16, 16

    key = jax.random.PRNGKey(0)
    k_h, k_s, k_w, k_m = jax.random.split(key, 4)

    hidden = jax.random.normal(k_h, (B, C_in, H, W), dtype=jnp.float32)
    style = jax.random.normal(k_s, (B, style_dim), dtype=jnp.float32)

    params = {
        # torch.randn(channels_out, channels_in, k, k)
        "conv_weight": jax.random.normal(k_w, (C_out, C_in, 1, 1), jnp.float32),
        # nn.Linear(style_dim, channels_in)
        "mod_weight": jax.random.normal(k_m, (C_in, style_dim), jnp.float32)
                      * (1.0 / math.sqrt(style_dim)),
        # modulation.bias.data.fill_(1.0)
        "mod_bias": jnp.ones((C_in,), jnp.float32),
        # nn.Parameter(torch.zeros(1, channels_out, 1, 1))
        "out_bias": jnp.zeros((1, C_out, 1, 1), jnp.float32),
    }

    out = multichannel_image(hidden, style, params)
    out = jax.block_until_ready(out)

    ref = _reference(hidden, style, params)
    assert out.shape == (B, C_out, H, W)
    assert jnp.allclose(out, ref, atol=1e-5, rtol=1e-5)

    print("KERNEL_OK")
</pallas_src>

<mosaic_0001>
module attributes {stable_mosaic.version = 11 : i64} {
  func.func @_mc_image_kernel(%arg0: i32, %arg1: i32, %arg2: memref<1x4x256xf32, #tpu.memory_space<vmem>>, %arg3: memref<1x8x4xf32, #tpu.memory_space<vmem>>, %arg4: memref<8x1xf32, #tpu.memory_space<vmem>>, %arg5: memref<1x8x256xf32, #tpu.memory_space<vmem>>) attributes {dimension_semantics = [#tpu.dimension_semantics<parallel>, #tpu.dimension_semantics<parallel>], iteration_bounds = array<i64: 2, 1>, scalar_prefetch = 0 : i64, scratch_operands = 0 : i64, tpu.core_type = #tpu.core_type<tc>, window_params = [{transform_indices = @transform_0, window_bounds = array<i64: 1, 4, 256>}, {transform_indices = @transform_1, window_bounds = array<i64: 1, 8, 4>}, {pipeline_mode = #tpu.pipeline_mode<synchronous>, transform_indices = @transform_2, window_bounds = array<i64: 8, 1>}, {transform_indices = @transform_3, window_bounds = array<i64: 1, 8, 256>}]} {
    %c0 = arith.constant 0 : index
    %c0_0 = arith.constant 0 : index
    %c0_1 = arith.constant 0 : index
    %0 = vector.load %arg3[%c0, %c0_0, %c0_1] : memref<1x8x4xf32, #tpu.memory_space<vmem>>, vector<1x8x4xf32>
    %1 = vector.shape_cast %0 : vector<1x8x4xf32> to vector<8x4xf32>
    %c0_2 = arith.constant 0 : index
    %c0_3 = arith.constant 0 : index
    %c0_4 = arith.constant 0 : index
    %2 = vector.load %arg2[%c0_2, %c0_3, %c0_4] : memref<1x4x256xf32, #tpu.memory_space<vmem>>, vector<1x4x256xf32>
    %3 = vector.shape_cast %2 : vector<1x4x256xf32> to vector<4x256xf32>
    %cst = arith.constant dense<0.000000e+00> : vector<8x256xf32>
    %4 = tpu.matmul %1, %3, %cst {dimension_numbers = #tpu.dot_dimension_numbers<[1], [0], [0], [1], [0, 0, 1, 1], [], []>} : vector<8x4xf32>, vector<4x256xf32>, vector<8x256xf32> -> vector<8x256xf32>
    %c0_5 = arith.constant 0 : index
    %c0_6 = arith.constant 0 : index
    %5 = vector.load %arg4[%c0_5, %c0_6] : memref<8x1xf32, #tpu.memory_space<vmem>>, vector<8x1xf32>
    %6 = vector.broadcast %5 : vector<8x1xf32> to vector<8x256xf32>
    %7 = arith.addf %4, %6 : vector<8x256xf32>
    %c0_7 = arith.constant 0 : index
    %c0_8 = arith.constant 0 : index
    %c0_9 = arith.constant 0 : index
    %8 = vector.load %arg5[%c0_7, %c0_8, %c0_9] : memref<1x8x256xf32, #tpu.memory_space<vmem>>, vector<1x8x256xf32>
    %9 = vector.shape_cast %8 : vector<1x8x256xf32> to vector<8x256xf32>
    %10 = vector.shape_cast %7 : vector<8x256xf32> to vector<1x8x256xf32>
    tpu.vector_store %arg5[%c0_7, %c0_8, %c0_9], %10 {strides = array<i32>} : memref<1x8x256xf32, #tpu.memory_space<vmem>>, vector<1x8x256xf32>,
    return
  }
  func.func @transform_0(%arg0: i32, %arg1: i32) -> (i32, i32, i32) {
    %c0_i32 = arith.constant 0 : i32
    %c0_i32_0 = arith.constant 0 : i32
    return %arg0, %c0_i32, %arg1 : i32, i32, i32
  }
  func.func @transform_1(%arg0: i32, %arg1: i32) -> (i32, i32, i32) {
    %c0_i32 = arith.constant 0 : i32
    %c0_i32_0 = arith.constant 0 : i32
    %c0_i32_1 = arith.constant 0 : i32
    return %arg0, %c0_i32, %c0_i32_0 : i32, i32, i32
  }
  func.func @transform_2(%arg0: i32, %arg1: i32) -> (i32, i32) {
    %c0_i32 = arith.constant 0 : i32
    %c0_i32_0 = arith.constant 0 : i32
    %c0_i32_1 = arith.constant 0 : i32
    return %c0_i32, %c0_i32_0 : i32, i32
  }
  func.func @transform_3(%arg0: i32, %arg1: i32) -> (i32, i32, i32) {
    %c0_i32 = arith.constant 0 : i32
    %c0_i32_0 = arith.constant 0 : i32
    return %arg0, %c0_i32, %arg1 : i32, i32, i32
  }
}

</mosaic_0001>

<llo_original>
// kernel: tpu_custom_call.1
$region0: #{tpu_custom_call.1}
  #allocation0 [shape = 'u32[]', space=smem, size = 0x4, offset = 0x4, fixed_abs, tag = 'smem constant byte address 0x4 - core index']
  #allocation1 [shape = 'u32[144,128]{1,0:T(1,128)}', space=vmem, size = 0x12000, scoped, tag = 'internal scratch']
  %s0 = inlined_call_operand.vmem [shape: f32[2,4,256], index: 0, kind: input, shape index: {}]
  %s1 = inlined_call_operand.vmem [shape: f32[2,8,4], index: 1, kind: input, shape index: {}]
  %s2 = inlined_call_operand.vmem [shape: f32[8,1], index: 2, kind: input, shape index: {}]
  %s3 = inlined_call_operand.hbm [shape: f32[2,8,256], index: 3, kind: output, shape index: {}]
  %s4 = sld [smem:[#allocation0]]
  $region45: #{tpu_custom_call.1} parent=0
    _
  %s6 = ssub.s32 1, %s4
  %s7 = scalar_select 0, %s6, %s4
  $region1: #{tpu_custom_call.1} parent=0
    #allocation2 [shape = 'u8[16384]{0}', space=vmem, size = 0x4000, scoped, tag = 'output window, operand 0']
    #allocation3 [shape = 's32[2]{0}', space=sflag, size = 0x8, scoped, tag = 'scoped memory for tpu_custom_call.1']
    %8 = vsyncpa [#allocation3], 0
    %s9 = scalar_lea.sflag [#allocation3], 1
    %10 = vsyncpa %s9, 0
    loop: start=0, step=1, limit=4
    $region2: #{tpu_custom_call.1} parent=1 // loop_pre_header
      _
    $region3: #{tpu_custom_call.1} parent=1 // loop_header
      %s12 = sphi 0, %s16
      %p13 = scmp.ge.s32.totalorder %s12, 4
      %s19 = sphi 0, %s31
      %s20 = sphi 0, %s27
      %s21 = sphi 0, %s19
      %s22 = sphi 0, %s20
      %s23 = sphi 0, %s21
      %s24 = sphi 0, %s22
      %s36 = sphi 0, %s38
      %s39 = sphi 0, %s36
      %s40 = sphi 0, %s39
      %s56 = sphi 0, %s40
      %s62 = sphi 0, %s64
      %s65 = sphi 0, %s62
      %s66 = sphi 0, %s65
      %s82 = sphi 0, %s66
      %s86 = sphi 0, %s86
      %s88 = sphi 0, %s86
      %s89 = sphi 0, %s88
      %s103 = sphi 0, %s89
      %s111 = sphi 0, %s113
      %s114 = sphi 0, %s111
      %s115 = sphi 0, %s114
      %s131 = sphi 0, %s115
    $region4: #{tpu_custom_call.1} parent=1 // loop_header_branch
      %15 = sbr.rel (%p13) target = $region8
    $region5: #{tpu_custom_call.1} parent=1 // loop_body
      %s17 = ssub.s32 %s12, 1
      %s18 = ssub.s32 %s12, 2
      %s25 = sadd.s32 1, %s20
      %p26 = scmp.ge.s32.totalorder %s25, 1
      %s27 = scalar_select %p26, 0, %s25
      %s28 = sadd.s32 1, %s19
      %s29 = scalar_select %p26, %s28, %s19
      %p30 = scmp.ge.s32.totalorder %s29, 2
      %s31 = scalar_select %p30, 0, %s29
      %s32 = ssub.s32 %s19, %s31
      %s33 = ssub.s32 %s20, %s27
      %s34 = sor.u32 %s32, %s33
      %p35 = scmp.eq.s32.totalorder %s34, 0
      %s37 = sadd.s32 %s36, 1
      %s38 = scalar_select %p35, %s36, %s37
      %p41 = pneg %p35
      %p42 = scmp.eq.s32.totalorder %s12, 1
      %p43 = por %p41, %p42
      %p44 = scmp.ne.s32.totalorder %s36, %s39
      %p45 = scmp.eq.s32.totalorder %s12, 0
      %p46 = por %p44, %p45
      %p47 = scmp.ne.s32.totalorder %s36, %s39
      %p48 = scmp.eq.s32.totalorder %s17, 1
      %p49 = por %p47, %p48
      %p50 = scmp.ne.s32.totalorder %s39, %s40
      %p51 = scmp.eq.s32.totalorder %s17, 0
      %p52 = por %p50, %p51
      %p53 = scmp.ne.s32.totalorder %s39, %s40
      %p54 = scmp.eq.s32.totalorder %s18, 1
      %p55 = por %p53, %p54
      %p57 = scmp.ne.s32.totalorder %s40, %s56
      %p58 = scmp.eq.s32.totalorder %s18, 0
      %p59 = por %p57, %p58
      %s60 = ssub.s32 %s19, %s31
      %p61 = scmp.eq.s32.totalorder %s60, 0
      %s63 = sadd.s32 %s62, 1
      %s64 = scalar_select %p61, %s62, %s63
      %p67 = pneg %p61
      %p68 = scmp.eq.s32.totalorder %s12, 1
      %p69 = por %p67, %p68
      %p70 = scmp.ne.s32.totalorder %s62, %s65
      %p71 = scmp.eq.s32.totalorder %s12, 0
      %p72 = por %p70, %p71
      %p73 = scmp.ne.s32.totalorder %s62, %s65
      %p74 = scmp.eq.s32.totalorder %s17, 1
      %p75 = por %p73, %p74
      %p76 = scmp.ne.s32.totalorder %s65, %s66
      %p77 = scmp.eq.s32.totalorder %s17, 0
      %p78 = por %p76, %p77
      %p79 = scmp.ne.s32.totalorder %s65, %s66
      %p80 = scmp.eq.s32.totalorder %s18, 1
      %p81 = por %p79, %p80
      %p83 = scmp.ne.s32.totalorder %s66, %s82
      %p84 = scmp.eq.s32.totalorder %s18, 0
      %p85 = por %p83, %p84
      %s87 = sadd.s32 %s86, 1
      %p90 = scmp.eq.s32.totalorder %s12, 1
      %p91 = scmp.ne.s32.totalorder %s86, %s88
      %p92 = scmp.eq.s32.totalorder %s12, 0
      %p93 = por %p91, %p92
      %p94 = scmp.ne.s32.totalorder %s86, %s88
      %p95 = scmp.eq.s32.totalorder %s17, 1
      %p96 = por %p94, %p95
      %p97 = scmp.ne.s32.totalorder %s88, %s89
      %p98 = scmp.eq.s32.totalorder %s17, 0
      %p99 = por %p97, %p98
      %p100 = scmp.ne.s32.totalorder %s88, %s89
      %p101 = scmp.eq.s32.totalorder %s18, 1
      %p102 = por %p100, %p101
      %p104 = scmp.ne.s32.totalorder %s89, %s103
      %p105 = scmp.eq.s32.totalorder %s18, 0
      %p106 = por %p104, %p105
      %s107 = ssub.s32 %s19, %s31
      %s108 = ssub.s32 %s20, %s27
      %s109 = sor.u32 %s107, %s108
      %p110 = scmp.eq.s32.totalorder %s109, 0
      %s112 = sadd.s32 %s111, 1
      %s113 = scalar_select %p110, %s111, %s112
      %p116 = pneg %p110
      %p117 = scmp.eq.s32.totalorder %s12, 1
      %p118 = por %p116, %p117
      %p119 = scmp.ne.s32.totalorder %s111, %s114
      %p120 = scmp.eq.s32.totalorder %s12, 0
      %p121 = por %p119, %p120
      %p122 = scmp.ne.s32.totalorder %s111, %s114
      %p123 = scmp.eq.s32.totalorder %s17, 1
      %p124 = por %p122, %p123
      %p125 = scmp.ne.s32.totalorder %s114, %s115
      %p126 = scmp.eq.s32.totalorder %s17, 0
      %p127 = por %p125, %p126
      %p128 = scmp.ne.s32.totalorder %s114, %s115
      %p129 = scmp.eq.s32.totalorder %s18, 1
      %p130 = por %p128, %p129
      %p132 = scmp.ne.s32.totalorder %s115, %s131
      %p133 = scmp.eq.s32.totalorder %s18, 0
      %p134 = por %p132, %p133
      %p135 = scmp.le.s32.totalorder 1, %s12
      %p136 = scmp.lt.s32.totalorder %s12, 3
      %p137 = pnand %p135, %p136
      %p138 = pneg %p137
      // Predicated region
      $region9: #{tpu_custom_call.1} parent=5 // pred_check
        _
      $region10: #{tpu_custom_call.1} parent=5 // pred_check_branch
        %140 = sbr.rel (%p137) target = $region12
      $region11: #{tpu_custom_call.1} parent=5 // pred_region
        %s141 = ssub.s32 %s12, 1
        // Predicated region
        $region13: #{tpu_custom_call.1} parent=11 // pred_check
          %p142 = pneg %p99
        $region14: #{tpu_custom_call.1} parent=11 // pred_check_branch
          %144 = sbr.rel (%p142) target = $region16
        $region15: #{tpu_custom_call.1} parent=11 // pred_region
          _
        $region16: #{tpu_custom_call.1} parent=11 // pred_fallthru
          _
      $region12: #{tpu_custom_call.1} parent=5 // pred_fallthru
        _
      %p145 = scmp.lt.s32.totalorder %s12, 2
      // Predicated region
      $region17: #{tpu_custom_call.1} parent=5 // pred_check
        %p146 = pneg %p145
      $region18: #{tpu_custom_call.1} parent=5 // pred_check_branch
        %148 = sbr.rel (%p146) target = $region20
      $region19: #{tpu_custom_call.1} parent=5 // pred_region
        // Predicated region
        $region21: #{tpu_custom_call.1} parent=19 // pred_check
          %p149 = pneg %p46
        $region22: #{tpu_custom_call.1} parent=19 // pred_check_branch
          %151 = sbr.rel (%p149) target = $region24
        $region23: #{tpu_custom_call.1} parent=19 // pred_region
          %s152 = smul.u32 2, %s20
          %p153 = scmp.lt.s32.totalorder %s19, 1
          %s154 = scalar_select %p153, %s19, 1
          %p155 = scmp.lt.s32.totalorder %s152, 1
          %s156 = scalar_select %p155, %s152, 1
          %s157 = smul.addr %s154, 2
          %s158 = sadd.s32 %s156, %s157
          %s159 = smul.addr %s158, 4
          %s160 = scalar_lea.vmem %s0, %s159
          %s161 = smul.u32 2, %s20
        $region24: #{tpu_custom_call.1} parent=19 // pred_fallthru
          _
        // Predicated region
        $region25: #{tpu_custom_call.1} parent=19 // pred_check
          %p162 = pneg %p72
        $region26: #{tpu_custom_call.1} parent=19 // pred_check_branch
          %164 = sbr.rel (%p162) target = $region28
        $region27: #{tpu_custom_call.1} parent=19 // pred_region
          %p165 = scmp.lt.s32.totalorder %s19, 1
          %s166 = scalar_select %p165, %s19, 1
          %s167 = smul.addr %s166, 8
          %s168 = scalar_lea.vmem %s1, %s167
        $region28: #{tpu_custom_call.1} parent=19 // pred_fallthru
          _
      $region20: #{tpu_custom_call.1} parent=5 // pred_fallthru
        _
      %p169 = scmp.le.s32.totalorder 1, %s12
      %p170 = scmp.lt.s32.totalorder %s12, 3
      %p171 = pnand %p169, %p170
      %p172 = pneg %p171
      // Predicated region
      $region29: #{tpu_custom_call.1} parent=5 // pred_check
        _
      $region30: #{tpu_custom_call.1} parent=5 // pred_check_branch
        %174 = sbr.rel (%p171) target = $region32
      $region31: #{tpu_custom_call.1} parent=5 // pred_region
        %s175 = ssub.s32 %s12, 1
        %s176 = smul.u32 2, %s22
        %p177 = scmp.lt.s32.totalorder %s21, 1
        %s178 = scalar_select %p177, %s21, 1
        %p179 = scmp.lt.s32.totalorder %s176, 1
        %s180 = scalar_select %p179, %s176, 1
        %s181 = smul.addr %s178, 2
        %s182 = sadd.s32 %s180, %s181
        %s183 = smul.addr %s182, 4
        %s184 = scalar_lea.vmem %s0, %s183
        %p185 = pneg %p52
        %p186 = pneg %p49
        %p187 = scmp.lt.s32.totalorder %s21, 1
        %s188 = scalar_select %p187, %s21, 1
        %s189 = smul.addr %s188, 8
        %s190 = scalar_lea.vmem %s1, %s189
        %p191 = pneg %p78
        %p192 = pneg %p75
        %p193 = pneg %p99
        %p194 = pneg %p96
        %p195 = pneg %p127
        %p196 = pneg %p124
        %s197 = sand.u32 %s114, 1
        %s198 = scalar_lea.sflag [#allocation3], %s197
        %s199 = sand.u32 %s114, 1
        %s200 = smul.addr %s199, 16
        %s201 = scalar_lea.vmem [#allocation2], %s200
        %s202 = smul.u32 2, %s22
        %p203 = scmp.lt.s32.totalorder %s21, 1
        %s204 = scalar_select %p203, %s21, 1
        %p205 = scmp.lt.s32.totalorder %s202, 1
        %s206 = scalar_select %p205, %s202, 1
        %s207 = smul.addr %s204, 2
        %s208 = sadd.s32 %s206, %s207
        %s209 = smul.addr %s208, 4
        %s210 = scalar_lea.vmem %s0, %s209
        %s211 = smul.u32 2, %s22
        %p212 = scmp.lt.s32.totalorder %s21, 1
        %s213 = scalar_select %p212, %s21, 1
        %s214 = smul.addr %s213, 8
        %s215 = scalar_lea.vmem %s1, %s214
        %s216 = smul.u32 2, %s22
        %v217 = vld [vmem:[%s215] sm:$0xff]
        %v218 = vld [vmem:[%s210] sm:$0xff]
        %v219 = vld [vmem:[%s2] sm:$0xff]
        %221 = vset.pattern.permute.xlu0 0
        %222 = vperm.xlu0 %221, %v219
        %v223 = vpop.permute.xlu0 %222
        %v226 = vcombine.high %v218, %v218
        %vm227 = vcmask 31744
        %v229 = vsel %vm227, %v217, 0
        %vm231 = vcmask 1043456
        %v232 = vsel %vm231, %v218, 0
        %v234 = vsel %vm231, %v226, 0
        %236 = vmatprep.subr.mxu0 %v234
        %237 = vmatpush1.msra.mxu0 %v232
        %238 = vmatprep.subr.mxu0 0.0
        %239 = vmatpush1.msra.mxu0 0.0
        %240 = vmatprep.subr.mxu0 0.0
        %241 = vmatpush1.msra.mxu0 0.0
        %242 = vmatprep.subr.mxu0 0.0
        %243 = vmatpush1.msra.mxu0 0.0
        %244 = vmatprep.subr.mxu0 0.0
        %245 = vmatpush1.msra.mxu0 0.0
        %246 = vmatprep.subr.mxu0 0.0
        %247 = vmatpush1.msra.mxu0 0.0
        %248 = vmatprep.subr.mxu0 0.0
        %249 = vmatpush1.msra.mxu0 0.0
        %250 = vmatprep.subr.mxu0 0.0
        %251 = vmatpush1.msra.mxu0 0.0
        %252 = vmatprep.subr.mxu0 0.0
        %253 = vmatpush1.msra.mxu0 0.0
        %254 = vmatprep.subr.mxu0 0.0
        %255 = vmatpush1.msra.mxu0 0.0
        %256 = vmatprep.subr.mxu0 0.0
        %257 = vmatpush1.msra.mxu0 0.0
        %258 = vmatprep.subr.mxu0 0.0
        %259 = vmatpush1.msra.mxu0 0.0
        %260 = vmatprep.subr.mxu0 0.0
        %261 = vmatpush1.msra.mxu0 0.0
        %262 = vmatprep.subr.mxu0 0.0
        %263 = vmatpush1.msra.mxu0 0.0
        %264 = vmatprep.subr.mxu0 0.0
        %265 = vmatpush1.msra.mxu0 0.0
        %266 = vmatprep.subr.mxu0 0.0
        %267 = vmatpush1.msra.mxu0 0.0
        %268 = vmatprep.subr.mxu0 0.0
        %269 = vmatpush1.msra.mxu0 0.0
        %270 = vmatprep.subr.mxu0 0.0
        %271 = vmatpush1.msra.mxu0 0.0
        %272 = vmatprep.subr.mxu0 0.0
        %273 = vmatpush1.msra.mxu0 0.0
        %274 = vmatprep.subr.mxu0 0.0
        %275 = vmatpush1.msra.mxu0 0.0
        %276 = vmatprep.subr.mxu0 0.0
        %277 = vmatpush1.msra.mxu0 0.0
        %278 = vmatprep.subr.mxu0 0.0
        %279 = vmatpush1.msra.mxu0 0.0
        %280 = vmatprep.subr.mxu0 0.0
        %281 = vmatpush1.msra.mxu0 0.0
        %282 = vmatprep.subr.mxu0 0.0
        %283 = vmatpush1.msra.mxu0 0.0
        %284 = vmatprep.subr.mxu0 0.0
        %285 = vmatpush1.msra.mxu0 0.0
        %286 = vmatprep.subr.mxu0 0.0
        %287 = vmatpush1.msra.mxu0 0.0
        %288 = vmatprep.subr.mxu0 0.0
        %289 = vmatpush1.msra.mxu0 0.0
        %290 = vmatprep.subr.mxu0 0.0
        %291 = vmatpush1.msra.mxu0 0.0
        %292 = vmatprep.subr.mxu0 0.0
        %293 = vmatpush1.msra.mxu0 0.0
        %294 = vmatprep.subr.mxu0 0.0
        %295 = vmatpush1.msra.mxu0 0.0
        %296 = vmatprep.subr.mxu0 0.0
        %297 = vmatpush1.msra.mxu0 0.0
        %298 = vmatprep.subr.mxu0 0.0
        %299 = vmatpush1.msra.mxu0 0.0
        %300 = vmatprep.mubr.f32.mxu0 0.0
        %301 = vmatmul.mubr.f32.gmra.mrb[0].mxu0 %v229
        %v302 = vpop.f32.mrb[0].mxu0
        %v303 = vadd.f32 %v223, %v302
        %v304 = vpop.f32.mrb[0].mxu0
        %v305 = vadd.f32 %v223, %v304
        %306 = vdwg.mxu0
        %307 = vst [vmem:[%s201] sm:$0xff] %v303
        %308 = vst [vmem:[%s201 + $0x8] sm:$0xff] %v305
        %s309 = sand.u32 %s114, 1
        %s310 = scalar_lea.sflag [#allocation3], %s309
        %s311 = sand.u32 %s114, 1
        %s312 = smul.addr %s311, 16
        %s313 = scalar_lea.vmem [#allocation2], %s312
        // Predicated region
        $region33: #{tpu_custom_call.1} parent=31 // pred_check
          %p314 = pneg %p124
        $region34: #{tpu_custom_call.1} parent=31 // pred_check_branch
          %316 = sbr.rel (%p314) target = $region36
        $region35: #{tpu_custom_call.1} parent=31 // pred_region
          %s317 = smul.u32 2, %s22
          %s319 = ssub.s32 256, 256
          %320 = vsyncadd %s310, %s319
          %s321 = smul.addr %s21, 2
          %s322 = sadd.s32 %s317, %s321
          %s323 = smul.addr %s322, 128
          %s324 = scalar_lea.hbm %s3, %s323
          %s326 = sshll.u32 %s313, 4
          %s327 = int_to_ptr.vmem [resolvable:$true] %s326
          %329 = dma.vmem_to_hbm [thread:$0]  %s327, 256, %s324, %s310
        $region36: #{tpu_custom_call.1} parent=31 // pred_fallthru
          _
      $region32: #{tpu_custom_call.1} parent=5 // pred_fallthru
        _
      %p330 = scmp.le.s32.totalorder 2, %s12
      // Predicated region
      $region37: #{tpu_custom_call.1} parent=5 // pred_check
        %p331 = pneg %p330
      $region38: #{tpu_custom_call.1} parent=5 // pred_check_branch
        %333 = sbr.rel (%p331) target = $region40
      $region39: #{tpu_custom_call.1} parent=5 // pred_region
        %s334 = ssub.s32 %s12, 2
        // Predicated region
        $region41: #{tpu_custom_call.1} parent=39 // pred_check
          %p335 = pneg %p130
        $region42: #{tpu_custom_call.1} parent=39 // pred_check_branch
          %337 = sbr.rel (%p335) target = $region44
        $region43: #{tpu_custom_call.1} parent=39 // pred_region
          %s338 = sand.u32 %s115, 1
          %s339 = scalar_lea.sflag [#allocation3], %s338
          %s340 = sand.u32 %s115, 1
          %s341 = smul.addr %s340, 16
          %s342 = scalar_lea.vmem [#allocation2], %s341
          %343 = dma.done %s339, 256
        $region44: #{tpu_custom_call.1} parent=39 // pred_fallthru
          _
      $region40: #{tpu_custom_call.1} parent=5 // pred_fallthru
        _
    $region6: #{tpu_custom_call.1} parent=1 // loop_footer
      %s16 = sadd.s32 1, %s12
    $region7: #{tpu_custom_call.1} parent=1 // loop_footer_branch
      %11 = sbr.rel target = $region3
    $region8: #{tpu_custom_call.1} parent=1 // loop_exit
      _
    %344 = vsyncpa [#allocation3], 1
    %s345 = scalar_lea.sflag [#allocation3], 1
    %346 = vsyncpa %s345, 1

</llo_original>
